<compile_context>
chip_gen: v5e
topology: v5e:2x2
jax: 0.10.0
libtpu: 0.0.40
codegen_flags: <defaults>
</compile_context>

<pallas_src>
import functools

import jax
import jax.numpy as jnp
from jax.experimental import pallas as pl
from jax.experimental.pallas import tpu as pltpu


def _round_up(x, m):
    return ((x + m - 1) // m) * m


def _vmem_capacity_bytes():
    """Generation-aware VMEM size (64 MiB on v7x, 128 MiB on v5e/v6e)."""
    try:
        cap = getattr(pltpu.get_tpu_info(), "vmem_capacity_bytes", None)
        if cap:
            return int(cap)
    except Exception:
        pass
    return 64 << 20  # conservative default (v7x)


def _select_tiles(n, sublane, tm_target, tk_target):
    """Pick row / reduction tiles: minimal padding, sublane-aligned, and an
    even row-tile count (when small) so v7x's two TensorCores stay balanced."""
    # --- row tile (adj rows / output rows) ---
    if n <= tm_target:
        tm, n_rows = n, n                        # single full-extent tile
    else:
        n_row_tiles = -(-n // tm_target)
        if n_row_tiles % 2 and n_row_tiles < 8:  # even split across 2 TCs
            n_row_tiles += 1
        tm = _round_up(-(-n // n_row_tiles), sublane)
        n_rows = _round_up(n, tm)
    # --- reduction tile (adj cols / X rows) ---
    if n <= tk_target:
        tk, n_cols = n, n                        # single full-extent tile
    else:
        n_k_tiles = -(-n // tk_target)
        tk = _round_up(-(-n // n_k_tiles), 128)
        n_cols = _round_up(n, tk)
    return tm, n_rows, tk, n_cols


def _agg_stream_kernel(adj_ref, x_ref, b_ref, out_ref, acc_ref):
    """One (row-tile i, reduction-tile k) step with streamed X tiles.

    adj_ref: (TM, TK)  x_ref: (TK, F)  b_ref: (1, F) f32
    out_ref: (TM, F) f32  acc_ref: (TM, F) f32 (persists over k)
    """
    k = pl.program_id(1)

    @pl.when(k == 0)
    def _init():
        acc_ref[...] = jnp.zeros_like(acc_ref)

    acc_ref[...] += jnp.dot(adj_ref[...], x_ref[...],
                            preferred_element_type=jnp.float32)

    @pl.when(k == pl.num_programs(1) - 1)
    def _finalize():
        out_ref[...] = (acc_ref[...] + b_ref[...]).astype(out_ref.dtype)


def _agg_resident_kernel(adj_ref, x_ref, b_ref, out_ref, acc_ref, *, tk):
    """Same as above, but X is the whole VMEM-resident matrix (constant
    index_map); slice the current reduction window in-kernel so X is DMA'd
    from HBM only once while adj streams."""
    k = pl.program_id(1)

    @pl.when(k == 0)
    def _init():
        acc_ref[...] = jnp.zeros_like(acc_ref)

    start = pl.multiple_of(k * tk, 128)
    acc_ref[...] += jnp.dot(adj_ref[...], x_ref[pl.ds(start, tk), :],
                            preferred_element_type=jnp.float32)

    @pl.when(k == pl.num_programs(1) - 1)
    def _finalize():
        out_ref[...] = (acc_ref[...] + b_ref[...]).astype(out_ref.dtype)


def graph_convolution(adj, features, weight, bias, *,
                      compute_dtype=jnp.float32,
                      tm_target=512, tk_target=1024,
                      x_resident=None):
    """GraphConvolution forward: Linear(adj @ features).

    adj: [N, N], features: [N, F_in], weight: [F_out, F_in] (PyTorch Linear
    layout), bias: [F_out].  Returns float32 [N, F_out].
    """
    N = adj.shape[0]
    f_in = features.shape[1]
    f_out = weight.shape[0]
    f_in_p = _round_up(f_in, 128)
    f_out_p = _round_up(f_out, 128)

    itemsize = jnp.dtype(compute_dtype).itemsize
    sublane = {4: 8, 2: 16, 1: 32}.get(itemsize, 8)

    # ---- reassociate: apply W on whichever side gives the narrower width for
    # ---- the dominant N x N aggregation. -----------------------------------
    hi = jax.lax.Precision.HIGHEST
    premultiply = f_out_p <= f_in_p
    if premultiply:
        # X = features @ W^T (tiny matmul, f32); kernel computes adj @ X + b.
        x_full = jnp.dot(features, weight.T, precision=hi)
        f_p = f_out_p
    else:
        # Kernel computes agg = adj @ features; Linear applied afterwards.
        x_full = features
        f_p = f_in_p

    # ---- generation-aware VMEM / tile budget. -------------------------------
    vmem_cap = _vmem_capacity_bytes()
    usable = int(vmem_cap * 0.70)
    resident_cap = min(8 << 20, usable // 6)

    tm_t, tk_t = tm_target, tk_target
    while True:
        tm, n_rows, tk, n_cols = _select_tiles(N, sublane, tm_t, tk_t)
        n_k = n_cols // tk
        x_full_bytes = n_cols * f_p * itemsize
        resident = (n_k > 1) and (x_resident if x_resident is not None
                                  else x_full_bytes <= resident_cap)
        x_block_bytes = x_full_bytes if resident else tk * f_p * itemsize
        vmem_needed = (2 * tm * tk * itemsize      # adj tiles (double-buffered)
                       + 2 * x_block_bytes         # X block(s)
                       + 2 * tm * f_p * 4          # output tile
                       + tm * f_p * 4              # f32 accumulator
                       + 2 * 8 * f_p * 4)          # bias
        if vmem_needed <= usable or (tm_t <= 128 and tk_t <= 256):
            break
        if tk_t > 256:
            tk_t //= 2
        elif tm_t > 128:
            tm_t //= 2
        else:
            break
    vmem_limit = int(min(max(vmem_needed + (4 << 20), 16 << 20),
                         int(vmem_cap * 0.75)))

    # ---- operand prep: only pad what needs padding (tiles usually divide N so
    # ---- no extra O(N^2) copy of adj), cast to the compute dtype. -----------
    adj_c = adj
    if n_rows != N or n_cols != N:
        adj_c = jnp.pad(adj_c, ((0, n_rows - N), (0, n_cols - N)))
    if adj_c.dtype != compute_dtype:
        adj_c = adj_c.astype(compute_dtype)

    x_c = x_full
    if n_cols != N or f_p != x_full.shape[1]:
        x_c = jnp.pad(x_c, ((0, n_cols - N), (0, f_p - x_full.shape[1])))
    if x_c.dtype != compute_dtype:
        x_c = x_c.astype(compute_dtype)

    if premultiply:
        b_c = jnp.pad(bias.astype(jnp.float32), (0, f_out_p - f_out))
    else:
        b_c = jnp.zeros((f_p,), jnp.float32)
    b_c = b_c.reshape(1, f_p)

    grid = (n_rows // tm, n_k)
    x_spec = (pl.BlockSpec((n_cols, f_p), lambda i, k: (0, 0)) if resident
              else pl.BlockSpec((tk, f_p), lambda i, k: (k, 0)))
    kernel = (functools.partial(_agg_resident_kernel, tk=tk) if resident
              else _agg_stream_kernel)

    # TODO(synk): block-sparse tile skip (scalar-prefetched per-tile nnz table +
    #   pl.when / data-dependent index_map) for real sparse graph adjacency.
    # TODO(synk): fp8 adj operand on v7x (per-row scaling) to halve the dominant
    #   streamed bytes vs bf16.
    out_padded = pl.pallas_call(
        kernel,
        out_shape=jax.ShapeDtypeStruct((n_rows, f_p), jnp.float32),
        grid_spec=pltpu.PrefetchScalarGridSpec(
            num_scalar_prefetch=0,
            grid=grid,
            in_specs=[
                pl.BlockSpec((tm, tk), lambda i, k: (i, k)),   # adj tile
                x_spec,                                        # X (H or features)
                pl.BlockSpec((1, f_p), lambda i, k: (0, 0)),   # bias (resident)
            ],
            out_specs=pl.BlockSpec((tm, f_p), lambda i, k: (i, 0)),
            scratch_shapes=[pltpu.VMEM((tm, f_p), jnp.float32)],
        ),
        compiler_params=pltpu.CompilerParams(
            dimension_semantics=("parallel", "arbitrary"),
            vmem_limit_bytes=vmem_limit,
        ),
    )(adj_c, x_c, b_c)

    if premultiply:
        return out_padded[:N, :f_out]
    agg = out_padded[:N, :f_in]
    return jnp.dot(agg, weight.T.astype(jnp.float32), precision=hi) + bias


if __name__ == "__main__":
    def make_inputs(key, n, f_in, f_out):
        k_adj, k_feat, k_w, k_b = jax.random.split(key, 4)
        adj = jax.random.uniform(k_adj, (n, n), dtype=jnp.float32)
        feats = jax.random.normal(k_feat, (n, f_in), dtype=jnp.float32)
        bound = 1.0 / (f_in ** 0.5)
        w = jax.random.uniform(k_w, (f_out, f_in), minval=-bound, maxval=bound,
                               dtype=jnp.float32)
        b = jax.random.uniform(k_b, (f_out,), minval=-bound, maxval=bound,
                               dtype=jnp.float32)
        return adj, feats, w, b

    hi = jax.lax.Precision.HIGHEST

    def reference(adj, feats, w, b):
        return jnp.dot(jnp.dot(adj, feats, precision=hi), w.T, precision=hi) + b

    # --- Case 1: tiny module-implied shapes (single grid cell, premultiply). --
    adj, feats, w, b = make_inputs(jax.random.PRNGKey(0), 8, 32, 16)
    out = jax.block_until_ready(graph_convolution(adj, feats, w, b))
    assert out.shape == (8, 16)
    assert jnp.allclose(out, reference(adj, feats, w, b), atol=1e-3, rtol=1e-3), \
        "small f32 case mismatch"

    # --- Case 2: 640-node graph -> 2 even row tiles, no padded adj copy,
    # --- W premultiplied (F_out_p=128 < F_in_p=256 halves aggregation width). -
    adj2, feats2, w2, b2 = make_inputs(jax.random.PRNGKey(1), 640, 200, 96)
    out2 = jax.block_until_ready(graph_convolution(adj2, feats2, w2, b2))
    assert out2.shape == (640, 96)
    assert jnp.allclose(out2, reference(adj2, feats2, w2, b2),
                        atol=2e-2, rtol=2e-2), "tiled f32 case mismatch"

    # --- Case 3: F_out > F_in (post-multiply path) with small tiles to exercise
    # --- the multi-step reduction grid, both resident-X and streamed-X kernels.
    adj3, feats3, w3, b3 = make_inputs(jax.random.PRNGKey(2), 384, 64, 256)
    ref3 = reference(adj3, feats3, w3, b3)
    for res in (True, False):
        out3 = jax.block_until_ready(
            graph_convolution(adj3, feats3, w3, b3,
                              tm_target=128, tk_target=128, x_resident=res))
        assert out3.shape == (384, 256)
        assert jnp.allclose(out3, ref3, atol=2e-2, rtol=2e-2), \
            f"multi-k case mismatch (resident={res})"

    # --- Case 4: bf16 compute path (all generations; f32 accumulation). -------
    out4 = jax.block_until_ready(
        graph_convolution(adj2, feats2, w2, b2, compute_dtype=jnp.bfloat16))
    h = jnp.dot(feats2, w2.T, precision=hi)
    ref4 = jnp.dot(adj2.astype(jnp.bfloat16), h.astype(jnp.bfloat16),
                   preferred_element_type=jnp.float32) + b2
    assert out4.shape == (640, 96)
    assert jnp.allclose(out4, ref4, atol=5e-2, rtol=5e-2), "bf16 case mismatch"

    print("KERNEL_OK")
</pallas_src>

<mosaic_0001>
module attributes {stable_mosaic.version = 11 : i64} {
  func.func @_agg_stream_kernel(%arg0: i32, %arg1: i32, %arg2: memref<8x8xf32, #tpu.memory_space<vmem>>, %arg3: memref<8x128xf32, #tpu.memory_space<vmem>>, %arg4: memref<1x128xf32, #tpu.memory_space<vmem>>, %arg5: memref<8x128xf32, #tpu.memory_space<vmem>>, %arg6: memref<8x128xf32, #tpu.memory_space<vmem>>) attributes {dimension_semantics = [#tpu.dimension_semantics<parallel>, #tpu.dimension_semantics<arbitrary>], iteration_bounds = array<i64: 1, 1>, scalar_prefetch = 0 : i64, scratch_operands = 1 : i64, tpu.core_type = #tpu.core_type<tc>, window_params = [{transform_indices = @transform_0, window_bounds = array<i64: 8, 8>}, {transform_indices = @transform_1, window_bounds = array<i64: 8, 128>}, {pipeline_mode = #tpu.pipeline_mode<synchronous>, transform_indices = @transform_2, window_bounds = array<i64: 1, 128>}, {transform_indices = @transform_3, window_bounds = array<i64: 8, 128>}]} {
    %c0_i32 = arith.constant 0 : i32
    %0 = arith.cmpi eq, %arg1, %c0_i32 : i32
    %1 = arith.extui %0 : i1 to i32
    %c0_i32_0 = arith.constant 0 : i32
    %2 = arith.cmpi ne, %1, %c0_i32_0 : i32
    scf.if %2 {
      %cst_10 = arith.constant 0.000000e+00 : f32
      %12 = vector.broadcast %cst_10 : f32 to vector<8x128xf32>
      %c0_11 = arith.constant 0 : index
      %c0_12 = arith.constant 0 : index
      %13 = vector.load %arg6[%c0_11, %c0_12] : memref<8x128xf32, #tpu.memory_space<vmem>>, vector<8x128xf32>
      tpu.vector_store %arg6[%c0_11, %c0_12], %12 {strides = array<i32>} : memref<8x128xf32, #tpu.memory_space<vmem>>, vector<8x128xf32>,
    } else {
    }
    %c0 = arith.constant 0 : index
    %c0_1 = arith.constant 0 : index
    %3 = vector.load %arg6[%c0, %c0_1] : memref<8x128xf32, #tpu.memory_space<vmem>>, vector<8x128xf32>
    %c0_2 = arith.constant 0 : index
    %c0_3 = arith.constant 0 : index
    %4 = vector.load %arg2[%c0_2, %c0_3] : memref<8x8xf32, #tpu.memory_space<vmem>>, vector<8x8xf32>
    %c0_4 = arith.constant 0 : index
    %c0_5 = arith.constant 0 : index
    %5 = vector.load %arg3[%c0_4, %c0_5] : memref<8x128xf32, #tpu.memory_space<vmem>>, vector<8x128xf32>
    %cst = arith.constant dense<0.000000e+00> : vector<8x128xf32>
    %6 = tpu.matmul %4, %5, %cst {dimension_numbers = #tpu.dot_dimension_numbers<[1], [0], [0], [1], [0, 0, 1, 1], [], []>} : vector<8x8xf32>, vector<8x128xf32>, vector<8x128xf32> -> vector<8x128xf32>
    %7 = arith.addf %3, %6 : vector<8x128xf32>
    %c0_6 = arith.constant 0 : index
    %c0_7 = arith.constant 0 : index
    %8 = vector.load %arg6[%c0_6, %c0_7] : memref<8x128xf32, #tpu.memory_space<vmem>>, vector<8x128xf32>
    tpu.vector_store %arg6[%c0_6, %c0_7], %7 {strides = array<i32>} : memref<8x128xf32, #tpu.memory_space<vmem>>, vector<8x128xf32>,
    %c0_i32_8 = arith.constant 0 : i32
    %9 = arith.cmpi eq, %arg1, %c0_i32_8 : i32
    %10 = arith.extui %9 : i1 to i32
    %c0_i32_9 = arith.constant 0 : i32
    %11 = arith.cmpi ne, %10, %c0_i32_9 : i32
    scf.if %11 {
      %c0_10 = arith.constant 0 : index
      %c0_11 = arith.constant 0 : index
      %12 = vector.load %arg6[%c0_10, %c0_11] : memref<8x128xf32, #tpu.memory_space<vmem>>, vector<8x128xf32>
      %c0_12 = arith.constant 0 : index
      %c0_13 = arith.constant 0 : index
      %13 = vector.load %arg4[%c0_12, %c0_13] : memref<1x128xf32, #tpu.memory_space<vmem>>, vector<1x128xf32>
      %14 = vector.broadcast %13 : vector<1x128xf32> to vector<8x128xf32>
      %15 = arith.addf %12, %14 : vector<8x128xf32>
      %c0_14 = arith.constant 0 : index
      %c0_15 = arith.constant 0 : index
      %16 = vector.load %arg5[%c0_14, %c0_15] : memref<8x128xf32, #tpu.memory_space<vmem>>, vector<8x128xf32>
      tpu.vector_store %arg5[%c0_14, %c0_15], %15 {strides = array<i32>} : memref<8x128xf32, #tpu.memory_space<vmem>>, vector<8x128xf32>,
    } else {
    }
    return
  }
  func.func @transform_0(%arg0: i32, %arg1: i32) -> (i32, i32) {
    %c0_i32 = arith.constant 0 : i32
    return %arg0, %arg1 : i32, i32
  }
  func.func @transform_1(%arg0: i32, %arg1: i32) -> (i32, i32) {
    %c0_i32 = arith.constant 0 : i32
    %c0_i32_0 = arith.constant 0 : i32
    return %arg1, %c0_i32 : i32, i32
  }
  func.func @transform_2(%arg0: i32, %arg1: i32) -> (i32, i32) {
    %c0_i32 = arith.constant 0 : i32
    %c0_i32_0 = arith.constant 0 : i32
    %c0_i32_1 = arith.constant 0 : i32
    return %c0_i32, %c0_i32_0 : i32, i32
  }
  func.func @transform_3(%arg0: i32, %arg1: i32) -> (i32, i32) {
    %c0_i32 = arith.constant 0 : i32
    %c0_i32_0 = arith.constant 0 : i32
    return %arg0, %c0_i32 : i32, i32
  }
}

</mosaic_0001>

<llo_original>
// kernel: tpu_custom_call.1
$region0: #{tpu_custom_call.1}
  #allocation0 [shape = 'u32[]', space=smem, size = 0x4, offset = 0x4, fixed_abs, tag = 'smem constant byte address 0x4 - core index']
  #allocation1 [shape = 'u32[72,128]{1,0:T(1,128)}', space=vmem, size = 0x9000, scoped, tag = 'internal scratch']
  #allocation2 [shape = 'f32[8,128]{1,0:T(8,128)}', space=vmem, size = 0x1000, scoped, tag = 'scratch operand']
  %s0 = inlined_call_operand.hbm [shape: f32[8,8], index: 0, kind: input, shape index: {}]
  %s1 = inlined_call_operand.hbm [shape: f32[8,128], index: 1, kind: input, shape index: {}]
  %s2 = inlined_call_operand.vmem [shape: f32[1,128], index: 2, kind: input, shape index: {}]
  %s3 = inlined_call_operand.hbm [shape: f32[8,128], index: 3, kind: output, shape index: {}]
  %s4 = sld [smem:[#allocation0]]
  $region38: #{tpu_custom_call.1} parent=0
    _
  %s6 = ssub.s32 1, %s4
  %s7 = scalar_select 0, %s6, %s4
  $region1: #{tpu_custom_call.1} parent=0
    #allocation3 [shape = 'u8[4096]{0}', space=vmem, size = 0x1000, scoped, tag = 'input window, operand 0, single buffered']
    #allocation4 [shape = 's32[1]{0}', space=sflag, size = 0x4, scoped, tag = 'scoped memory for tpu_custom_call.1']
    #allocation5 [shape = 's32[1]{0}', space=sflag, size = 0x4, scoped, tag = 'scoped memory for tpu_custom_call.1']
    #allocation6 [shape = 'u8[4096]{0}', space=vmem, size = 0x1000, scoped, tag = 'input window, operand 1, single buffered']
    #allocation7 [shape = 's32[1]{0}', space=sflag, size = 0x4, scoped, tag = 'scoped memory for tpu_custom_call.1']
    #allocation8 [shape = 'u8[4096]{0}', space=vmem, size = 0x1000, scoped, tag = 'output window, operand 0, single buffered']
    %8 = vsyncpa [#allocation4], 0
    %9 = vsyncpa [#allocation7], 0
    %10 = vsyncpa [#allocation5], 0
    // Predicated region
    $region2: #{tpu_custom_call.1} parent=1 // pred_check
      _
    $region3: #{tpu_custom_call.1} parent=1 // pred_check_branch
      %12 = sbr.rel (0) target = $region5
    $region4: #{tpu_custom_call.1} parent=1 // pred_region
      %14 = vsyncadd [#allocation4], 0
      %s16 = sshll.u32 %s0, 4
      %s17 = int_to_ptr.hbm [resolvable:$true] %s16
      %s18 = sshll.u32 [#allocation3], 4
      %s19 = int_to_ptr.vmem [resolvable:$true] %s18
      %21 = dma.hbm_to_vmem [thread:$0]  %s17, 128, %s19, [#allocation4]
    $region5: #{tpu_custom_call.1} parent=1 // pred_fallthru
      _
    // Predicated region
    $region6: #{tpu_custom_call.1} parent=1 // pred_check
      _
    $region7: #{tpu_custom_call.1} parent=1 // pred_check_branch
      %23 = sbr.rel (0) target = $region9
    $region8: #{tpu_custom_call.1} parent=1 // pred_region
      %25 = vsyncadd [#allocation7], 0
      %s27 = sshll.u32 %s1, 4
      %s28 = int_to_ptr.hbm [resolvable:$true] %s27
      %s29 = sshll.u32 [#allocation6], 4
      %s30 = int_to_ptr.vmem [resolvable:$true] %s29
      %32 = dma.hbm_to_vmem [thread:$0]  %s28, 128, %s30, [#allocation7]
    $region9: #{tpu_custom_call.1} parent=1 // pred_fallthru
      _
    // Predicated region
    $region10: #{tpu_custom_call.1} parent=1 // pred_check
      _
    $region11: #{tpu_custom_call.1} parent=1 // pred_check_branch
      %34 = sbr.rel (0) target = $region13
    $region12: #{tpu_custom_call.1} parent=1 // pred_region
      _
    $region13: #{tpu_custom_call.1} parent=1 // pred_fallthru
      _
    // Predicated region
    $region14: #{tpu_custom_call.1} parent=1 // pred_check
      _
    $region15: #{tpu_custom_call.1} parent=1 // pred_check_branch
      %36 = sbr.rel (0) target = $region17
    $region16: #{tpu_custom_call.1} parent=1 // pred_region
      %38 = dma.done [#allocation4], 128
    $region17: #{tpu_custom_call.1} parent=1 // pred_fallthru
      _
    // Predicated region
    $region18: #{tpu_custom_call.1} parent=1 // pred_check
      _
    $region19: #{tpu_custom_call.1} parent=1 // pred_check_branch
      %40 = sbr.rel (0) target = $region21
    $region20: #{tpu_custom_call.1} parent=1 // pred_region
      %42 = dma.done [#allocation7], 128
    $region21: #{tpu_custom_call.1} parent=1 // pred_fallthru
      _
    %p43 = scmp.eq.s32.totalorder 0, 0
    // Predicated region
    $region22: #{tpu_custom_call.1} parent=1 // pred_check
      %p44 = pneg %p43
    $region23: #{tpu_custom_call.1} parent=1 // pred_check_branch
      %46 = sbr.rel (%p44) target = $region25
    $region24: #{tpu_custom_call.1} parent=1 // pred_region
      %47 = vst [vmem:[#allocation2] sm:$0xff] 0.0
    $region25: #{tpu_custom_call.1} parent=1 // pred_fallthru
      _
    %v48 = vld [vmem:[#allocation2] sm:$0xff]
    %v49 = vld [vmem:[#allocation3] sm:$0xff]
    %v50 = vld [vmem:[#allocation6] sm:$0xff]
    %vm51 = vcmask 64512
    %v53 = vsel %vm51, %v49, 0
    %55 = vmatpush.msra.mxu0 0.0
    %56 = vmatpush.msra.mxu0 0.0
    %57 = vmatpush.msra.mxu0 0.0
    %58 = vmatpush.msra.mxu0 0.0
    %59 = vmatpush.msra.mxu0 0.0
    %60 = vmatpush.msra.mxu0 0.0
    %61 = vmatpush.msra.mxu0 0.0
    %62 = vmatpush.msra.mxu0 0.0
    %63 = vmatpush.msra.mxu0 0.0
    %64 = vmatpush.msra.mxu0 0.0
    %65 = vmatpush.msra.mxu0 0.0
    %66 = vmatpush.msra.mxu0 0.0
    %67 = vmatpush.msra.mxu0 0.0
    %68 = vmatpush.msra.mxu0 0.0
    %69 = vmatpush.msra.mxu0 0.0
    %70 = vmatpush.msra.mxu0 %v50
    %71 = vmatmul.f32.gmra.mxu0 %v53
    %v72 = vpop.f32.mrf.mxu0
    %v73 = vadd.f32 0.0, %v72
    %74 = vdwg.mxu0
    %v75 = vadd.f32 %v48, %v73
    %76 = vst [vmem:[#allocation2] sm:$0xff] %v75
    // Predicated region
    $region26: #{tpu_custom_call.1} parent=1 // pred_check
      %p77 = pneg %p43
    $region27: #{tpu_custom_call.1} parent=1 // pred_check_branch
      %79 = sbr.rel (%p77) target = $region29
    $region28: #{tpu_custom_call.1} parent=1 // pred_region
      %v80 = vld [vmem:[#allocation2] sm:$0xff]
      %v81 = vld [vmem:[%s2] sm:$0x1]
      %v83 = vperm.slane %v81, 0
      %v85 = vadd.f32 %v80, %v83
      %86 = vst [vmem:[#allocation8] sm:$0xff] %v85
    $region29: #{tpu_custom_call.1} parent=1 // pred_fallthru
      _
    // Predicated region
    $region30: #{tpu_custom_call.1} parent=1 // pred_check
      _
    $region31: #{tpu_custom_call.1} parent=1 // pred_check_branch
      %88 = sbr.rel (0) target = $region33
    $region32: #{tpu_custom_call.1} parent=1 // pred_region
      %90 = vsyncadd [#allocation5], 0
      %s92 = sshll.u32 [#allocation8], 4
      %s93 = int_to_ptr.vmem [resolvable:$true] %s92
      %s94 = sshll.u32 %s3, 4
      %s95 = int_to_ptr.hbm [resolvable:$true] %s94
      %97 = dma.vmem_to_hbm [thread:$0]  %s93, 128, %s95, [#allocation5]
    $region33: #{tpu_custom_call.1} parent=1 // pred_fallthru
      _
    // Predicated region
    $region34: #{tpu_custom_call.1} parent=1 // pred_check
      _
    $region35: #{tpu_custom_call.1} parent=1 // pred_check_branch
      %99 = sbr.rel (0) target = $region37
    $region36: #{tpu_custom_call.1} parent=1 // pred_region
      %101 = dma.done [#allocation5], 128
    $region37: #{tpu_custom_call.1} parent=1 // pred_fallthru
      _
    %102 = vsyncpa [#allocation4], 1
    %103 = vsyncpa [#allocation7], 1
    %104 = vsyncpa [#allocation5], 1

</llo_original>
